<compile_context>
chip_gen: v6e
topology: v6e:2x2x1
jax: 0.10.0
libtpu: 0.0.40
codegen_flags: <defaults>
</compile_context>

<pallas_src>
import functools

import jax
import jax.numpy as jnp
from jax.experimental import pallas as pl
from jax.experimental.pallas import tpu as pltpu


def _round_up(n, m):
    return ((n + m - 1) // m) * m


def _portfolio_head_kernel(x_ref, w1_ref, b1_ref, w2t_ref, b2_ref, out_ref):
    # x tile: (TILE_B, D).  Upcast immediately (handles f32 or bf16 inputs;
    # keeps all VPU/EUP elementwise work in f32 — required for v5e).
    x = x_ref[...].astype(jnp.float32)

    # --- Linear(input_dim, 32) + SiLU ---
    h = jnp.dot(x, w1_ref[...],
                preferred_element_type=jnp.float32,
                precision=jax.lax.Precision.HIGHEST) + b1_ref[...]
    h = h * jax.nn.sigmoid(h)                       # SiLU

    # --- Linear(32, 4), computed feature-major: o_t[f, b] = sum_k w2t[f,k]*h[b,k]
    # A·Bᵀ form (contract last dims of both) — no transpose of h needed.
    o_t = jax.lax.dot_general(
        w2t_ref[...], h,
        dimension_numbers=(((1,), (1,)), ((), ())),
        preferred_element_type=jnp.float32,
        precision=jax.lax.Precision.HIGHEST) + b2_ref[...]        # (4, TILE_B)

    # --- per-head activations, each applied only to its own row ---
    out = jnp.concatenate(
        [
            jnp.tanh(o_t[0:1, :]),          # correlation_to_portfolio
            jax.nn.sigmoid(o_t[1:2, :]),    # diversification_score
            o_t[2:3, :],                    # portfolio_beta (identity)
            jax.nn.sigmoid(o_t[3:4, :]),    # risk_contribution
        ],
        axis=0,
    )
    out_ref[...] = out.astype(out_ref.dtype)


@functools.partial(jax.jit, static_argnames=("tile_b",))
def portfolio_head_forward(x, w1, b1, w2, b2, *, tile_b=1024):
    """x: (B, D) f32/bf16.  w1: (D, 32), b1: (32,), w2: (32, 4), b2: (4,)."""
    B, D = x.shape
    H = w1.shape[1]
    O = w2.shape[1]

    # Batch tile: one full-array block for small B, otherwise `tile_b` rows
    # (multiple of 8 sublanes; 1024 is a multiple of 128 -> lane-dense output).
    if B <= tile_b:
        block_b = _round_up(max(B, 1), 8)
    else:
        block_b = tile_b
    b_pad = _round_up(B, block_b)
    if b_pad != B:
        x = jnp.pad(x, ((0, b_pad - B), (0, 0)))      # ragged last tile -> pad
    grid = (b_pad // block_b,)

    w1_r = w1.astype(jnp.float32)                     # (D, H)
    b1_r = b1.reshape(1, H).astype(jnp.float32)       # (1, H)
    w2_t = w2.T.astype(jnp.float32)                   # (O, H)  feature-major
    b2_r = b2.reshape(O, 1).astype(jnp.float32)       # (O, 1)

    out = pl.pallas_call(
        _portfolio_head_kernel,
        out_shape=jax.ShapeDtypeStruct((O, b_pad), jnp.float32),
        grid=grid,
        in_specs=[
            pl.BlockSpec((block_b, D), lambda i: (i, 0)),   # x: tiled on batch
            pl.BlockSpec((D, H), lambda i: (0, 0)),         # w1: resident
            pl.BlockSpec((1, H), lambda i: (0, 0)),         # b1: resident
            pl.BlockSpec((O, H), lambda i: (0, 0)),         # w2ᵀ: resident
            pl.BlockSpec((O, 1), lambda i: (0, 0)),         # b2: resident
        ],
        out_specs=pl.BlockSpec((O, block_b), lambda i: (0, i)),  # lane-dense
        compiler_params=pltpu.CompilerParams(
            dimension_semantics=("parallel",),               # megacore on v7x
        ),
    )(x, w1_r, b1_r, w2_t, b2_r)

    out = out[:, :B]                                   # drop padded columns
    return {
        'correlation_to_portfolio': out[0].reshape(B, 1),
        'diversification_score':    out[1].reshape(B, 1),
        'portfolio_beta':           out[2].reshape(B, 1),
        'risk_contribution':        out[3].reshape(B, 1),
    }


def _reference(x, w1, b1, w2, b2):
    x = x.astype(jnp.float32)
    h = jnp.dot(x, w1, precision=jax.lax.Precision.HIGHEST) + b1.reshape(1, -1)
    h = h * jax.nn.sigmoid(h)
    o = jnp.dot(h, w2, precision=jax.lax.Precision.HIGHEST) + b2.reshape(1, -1)
    return {
        'correlation_to_portfolio': jnp.tanh(o[:, 0:1]),
        'diversification_score':    jax.nn.sigmoid(o[:, 1:2]),
        'portfolio_beta':           o[:, 2:3],
        'risk_contribution':        jax.nn.sigmoid(o[:, 3:4]),
    }


if __name__ == "__main__":
    key = jax.random.PRNGKey(0)
    D, H, O = 16, 32, 4
    kx1, kx2, kw1, kb1, kw2, kb2 = jax.random.split(key, 6)

    # Deterministic fan-in-scaled params (like nn.Linear defaults).
    w1 = jax.random.uniform(kw1, (D, H), jnp.float32, -1.0, 1.0) / jnp.sqrt(D)
    b1 = jax.random.uniform(kb1, (H,), jnp.float32, -1.0, 1.0) / jnp.sqrt(D)
    w2 = jax.random.uniform(kw2, (H, O), jnp.float32, -1.0, 1.0) / jnp.sqrt(H)
    b2 = jax.random.uniform(kb2, (O,), jnp.float32, -1.0, 1.0) / jnp.sqrt(H)

    # 1) small ragged batch (single-tile / full-block path)
    B = 10
    x = jax.random.normal(kx1, (B, D), jnp.float32)
    out = portfolio_head_forward(x, w1, b1, w2, b2)
    jax.block_until_ready(out)
    ref = _reference(x, w1, b1, w2, b2)
    for k in ref:
        assert out[k].shape == (B, 1), (k, out[k].shape)
        assert jnp.allclose(out[k], ref[k], atol=1e-5, rtol=1e-5), k

    # 2) multi-tile batch exercising the pipelined grid + ragged last tile
    B2 = 2500
    x2 = jax.random.normal(kx2, (B2, D), jnp.float32)
    out2 = portfolio_head_forward(x2, w1, b1, w2, b2, tile_b=1024)
    jax.block_until_ready(out2)
    ref2 = _reference(x2, w1, b1, w2, b2)
    for k in ref2:
        assert out2[k].shape == (B2, 1), (k, out2[k].shape)
        assert jnp.allclose(out2[k], ref2[k], atol=1e-5, rtol=1e-5), k

    # 3) bf16 input path (halved HBM traffic on x); loose check vs f32 ref
    out3 = portfolio_head_forward(x2.astype(jnp.bfloat16), w1, b1, w2, b2)
    jax.block_until_ready(out3)
    for k in ref2:
        assert jnp.allclose(out3[k], ref2[k], atol=5e-2, rtol=5e-2), k

    print("KERNEL_OK")
</pallas_src>

<mosaic_0001>
module attributes {stable_mosaic.version = 11 : i64} {
  func.func @_portfolio_head_kernel(%arg0: i32, %arg1: memref<16x16xf32, #tpu.memory_space<vmem>>, %arg2: memref<16x32xf32, #tpu.memory_space<vmem>>, %arg3: memref<1x32xf32, #tpu.memory_space<vmem>>, %arg4: memref<4x32xf32, #tpu.memory_space<vmem>>, %arg5: memref<4x1xf32, #tpu.memory_space<vmem>>, %arg6: memref<4x16xf32, #tpu.memory_space<vmem>>) attributes {dimension_semantics = [#tpu.dimension_semantics<parallel>], iteration_bounds = array<i64: 1>, scalar_prefetch = 0 : i64, scratch_operands = 0 : i64, tpu.core_type = #tpu.core_type<tc>, window_params = [{transform_indices = @transform_0, window_bounds = array<i64: 16, 16>}, {pipeline_mode = #tpu.pipeline_mode<synchronous>, transform_indices = @transform_1, window_bounds = array<i64: 16, 32>}, {pipeline_mode = #tpu.pipeline_mode<synchronous>, transform_indices = @transform_2, window_bounds = array<i64: 1, 32>}, {pipeline_mode = #tpu.pipeline_mode<synchronous>, transform_indices = @transform_3, window_bounds = array<i64: 4, 32>}, {pipeline_mode = #tpu.pipeline_mode<synchronous>, transform_indices = @transform_4, window_bounds = array<i64: 4, 1>}, {transform_indices = @transform_5, window_bounds = array<i64: 4, 16>}]} {
    %c0 = arith.constant 0 : index
    %c0_0 = arith.constant 0 : index
    %0 = vector.load %arg1[%c0, %c0_0] : memref<16x16xf32, #tpu.memory_space<vmem>>, vector<16x16xf32>
    %c0_1 = arith.constant 0 : index
    %c0_2 = arith.constant 0 : index
    %1 = vector.load %arg2[%c0_1, %c0_2] : memref<16x32xf32, #tpu.memory_space<vmem>>, vector<16x32xf32>
    %cst = arith.constant dense<0.000000e+00> : vector<16x32xf32>
    %2 = tpu.matmul %0, %1, %cst {dimension_numbers = #tpu.dot_dimension_numbers<[1], [0], [0], [1], [0, 0, 1, 1], [], []>, precision = #tpu.contract_precision<fp32>} : vector<16x16xf32>, vector<16x32xf32>, vector<16x32xf32> -> vector<16x32xf32>
    %c0_3 = arith.constant 0 : index
    %c0_4 = arith.constant 0 : index
    %3 = vector.load %arg3[%c0_3, %c0_4] : memref<1x32xf32, #tpu.memory_space<vmem>>, vector<1x32xf32>
    %4 = vector.broadcast %3 : vector<1x32xf32> to vector<16x32xf32>
    %5 = arith.addf %2, %4 : vector<16x32xf32>
    %6 = arith.negf %5 : vector<16x32xf32>
    %7 = math.exp %6 : vector<16x32xf32>
    %cst_5 = arith.constant 1.000000e+00 : f32
    %8 = vector.broadcast %cst_5 : f32 to vector<16x32xf32>
    %9 = arith.addf %8, %7 : vector<16x32xf32>
    %10 = arith.divf %8, %9 : vector<16x32xf32>
    %11 = arith.mulf %5, %10 : vector<16x32xf32>
    %c0_6 = arith.constant 0 : index
    %c0_7 = arith.constant 0 : index
    %12 = vector.load %arg4[%c0_6, %c0_7] : memref<4x32xf32, #tpu.memory_space<vmem>>, vector<4x32xf32>
    %cst_8 = arith.constant dense<0.000000e+00> : vector<4x16xf32>
    %13 = tpu.matmul %12, %11, %cst_8 {dimension_numbers = #tpu.dot_dimension_numbers<[1], [1], [0], [0], [0, 0, 1, 0], [], []>, precision = #tpu.contract_precision<fp32>} : vector<4x32xf32>, vector<16x32xf32>, vector<4x16xf32> -> vector<4x16xf32>
    %c0_9 = arith.constant 0 : index
    %c0_10 = arith.constant 0 : index
    %14 = vector.load %arg5[%c0_9, %c0_10] : memref<4x1xf32, #tpu.memory_space<vmem>>, vector<4x1xf32>
    %15 = vector.broadcast %14 : vector<4x1xf32> to vector<4x16xf32>
    %16 = arith.addf %13, %15 : vector<4x16xf32>
    %17 = vector.extract_strided_slice %16 {offsets = [0, 0], sizes = [1, 16], strides = [1, 1]} : vector<4x16xf32> to vector<1x16xf32>
    %18 = math.tanh %17 : vector<1x16xf32>
    %19 = vector.extract_strided_slice %16 {offsets = [1, 0], sizes = [1, 16], strides = [1, 1]} : vector<4x16xf32> to vector<1x16xf32>
    %20 = arith.negf %19 : vector<1x16xf32>
    %21 = math.exp %20 : vector<1x16xf32>
    %cst_11 = arith.constant 1.000000e+00 : f32
    %22 = vector.broadcast %cst_11 : f32 to vector<1x16xf32>
    %23 = arith.addf %22, %21 : vector<1x16xf32>
    %24 = arith.divf %22, %23 : vector<1x16xf32>
    %25 = vector.extract_strided_slice %16 {offsets = [2, 0], sizes = [1, 16], strides = [1, 1]} : vector<4x16xf32> to vector<1x16xf32>
    %26 = vector.extract_strided_slice %16 {offsets = [3, 0], sizes = [1, 16], strides = [1, 1]} : vector<4x16xf32> to vector<1x16xf32>
    %27 = arith.negf %26 : vector<1x16xf32>
    %28 = math.exp %27 : vector<1x16xf32>
    %cst_12 = arith.constant 1.000000e+00 : f32
    %29 = vector.broadcast %cst_12 : f32 to vector<1x16xf32>
    %30 = arith.addf %29, %28 : vector<1x16xf32>
    %31 = arith.divf %29, %30 : vector<1x16xf32>
    %32 = tpu.concatenate %18, %24, %25, %31 in 0 : vector<1x16xf32>, vector<1x16xf32>, vector<1x16xf32>, vector<1x16xf32> -> vector<4x16xf32>
    %c0_13 = arith.constant 0 : index
    %c0_14 = arith.constant 0 : index
    %33 = vector.load %arg6[%c0_13, %c0_14] : memref<4x16xf32, #tpu.memory_space<vmem>>, vector<4x16xf32>
    tpu.vector_store %arg6[%c0_13, %c0_14], %32 {strides = array<i32>} : memref<4x16xf32, #tpu.memory_space<vmem>>, vector<4x16xf32>,
    return
  }
  func.func @transform_0(%arg0: i32) -> (i32, i32) {
    %c0_i32 = arith.constant 0 : i32
    %c0_i32_0 = arith.constant 0 : i32
    return %arg0, %c0_i32 : i32, i32
  }
  func.func @transform_1(%arg0: i32) -> (i32, i32) {
    %c0_i32 = arith.constant 0 : i32
    %c0_i32_0 = arith.constant 0 : i32
    %c0_i32_1 = arith.constant 0 : i32
    return %c0_i32, %c0_i32_0 : i32, i32
  }
  func.func @transform_2(%arg0: i32) -> (i32, i32) {
    %c0_i32 = arith.constant 0 : i32
    %c0_i32_0 = arith.constant 0 : i32
    %c0_i32_1 = arith.constant 0 : i32
    return %c0_i32, %c0_i32_0 : i32, i32
  }
  func.func @transform_3(%arg0: i32) -> (i32, i32) {
    %c0_i32 = arith.constant 0 : i32
    %c0_i32_0 = arith.constant 0 : i32
    %c0_i32_1 = arith.constant 0 : i32
    return %c0_i32, %c0_i32_0 : i32, i32
  }
  func.func @transform_4(%arg0: i32) -> (i32, i32) {
    %c0_i32 = arith.constant 0 : i32
    %c0_i32_0 = arith.constant 0 : i32
    %c0_i32_1 = arith.constant 0 : i32
    return %c0_i32, %c0_i32_0 : i32, i32
  }
  func.func @transform_5(%arg0: i32) -> (i32, i32) {
    %c0_i32 = arith.constant 0 : i32
    %c0_i32_0 = arith.constant 0 : i32
    return %c0_i32, %arg0 : i32, i32
  }
}

</mosaic_0001>

<llo_original>
// kernel: portfolio_head_forward.1
$region0: #{portfolio_head_forward.1}
  #allocation0 [shape = 'u32[]', space=smem, size = 0x4, offset = 0x4, fixed_abs, tag = 'smem constant byte address 0x4 - core index']
  #allocation1 [shape = 'u32[144,128]{1,0:T(1,128)}', space=vmem, size = 0x12000, scoped, tag = 'internal scratch']
  %s0 = inlined_call_operand.vmem [shape: f32[16,16], index: 0, kind: input, shape index: {}]
  %s1 = inlined_call_operand.vmem [shape: f32[16,32], index: 1, kind: input, shape index: {}]
  %s2 = inlined_call_operand.vmem [shape: f32[1,32], index: 2, kind: input, shape index: {}]
  %s3 = inlined_call_operand.vmem [shape: f32[4,32], index: 3, kind: input, shape index: {}]
  %s4 = inlined_call_operand.vmem [shape: f32[4,1], index: 4, kind: input, shape index: {}]
  %s5 = inlined_call_operand.vmem [shape: f32[4,16], index: 5, kind: output, shape index: {}]
  %s6 = sld [smem:[#allocation0]]
  $region30: #{portfolio_head_forward.1} parent=0
    _
  %s8 = ssub.s32 1, %s6
  %s9 = scalar_select 0, %s8, %s6
  // Predicated region
  $region2: #{portfolio_head_forward.1} parent=0 // pred_check
    _
  $region3: #{portfolio_head_forward.1} parent=0 // pred_check_branch
    %11 = sbr.rel (0) target = $region5
  $region4: #{portfolio_head_forward.1} parent=0 // pred_region
    _
  $region5: #{portfolio_head_forward.1} parent=0 // pred_fallthru
    _
  // Predicated region
  $region6: #{portfolio_head_forward.1} parent=0 // pred_check
    _
  $region7: #{portfolio_head_forward.1} parent=0 // pred_check_branch
    %13 = sbr.rel (0) target = $region9
  $region8: #{portfolio_head_forward.1} parent=0 // pred_region
    _
  $region9: #{portfolio_head_forward.1} parent=0 // pred_fallthru
    _
  // Predicated region
  $region10: #{portfolio_head_forward.1} parent=0 // pred_check
    _
  $region11: #{portfolio_head_forward.1} parent=0 // pred_check_branch
    %15 = sbr.rel (0) target = $region13
  $region12: #{portfolio_head_forward.1} parent=0 // pred_region
    _
  $region13: #{portfolio_head_forward.1} parent=0 // pred_fallthru
    _
  // Predicated region
  $region14: #{portfolio_head_forward.1} parent=0 // pred_check
    _
  $region15: #{portfolio_head_forward.1} parent=0 // pred_check_branch
    %17 = sbr.rel (0) target = $region17
  $region16: #{portfolio_head_forward.1} parent=0 // pred_region
    _
  $region17: #{portfolio_head_forward.1} parent=0 // pred_fallthru
    _
  // Predicated region
  $region18: #{portfolio_head_forward.1} parent=0 // pred_check
    _
  $region19: #{portfolio_head_forward.1} parent=0 // pred_check_branch
    %19 = sbr.rel (0) target = $region21
  $region20: #{portfolio_head_forward.1} parent=0 // pred_region
    _
  $region21: #{portfolio_head_forward.1} parent=0 // pred_fallthru
    _
  %v20 = vld [vmem:[%s0] sm:$0xff]
  %v21 = vld [vmem:[%s0 + $0x8] sm:$0xff]
  %v22 = vld [vmem:[%s1] sm:$0xff]
  %v23 = vld [vmem:[%s1 + $0x8] sm:$0xff]
  %v24 = vld [vmem:[%s2] sm:$0x1]
  %v26 = vlaneseq
  %v27 = vshrl.u32 %v26, 7
  %v28 = vsub.s32 0, %v27
  %v29 = vrot.slane %v24, %v28
  %vm31 = vcmask 130048
  %v33 = vsel %vm31, %v20, 0
  %v36 = vsel %vm31, %v21, 0
  %38 = vmatprep.subr.mxu0 0.0
  %39 = vmatpush1.msra.mxu0 0.0
  %40 = vmatprep.subr.mxu0 0.0
  %41 = vmatpush1.msra.mxu0 0.0
  %42 = vmatprep.subr.mxu0 0.0
  %43 = vmatpush1.msra.mxu0 0.0
  %44 = vmatprep.subr.mxu0 0.0
  %45 = vmatpush1.msra.mxu0 0.0
  %46 = vmatprep.subr.mxu0 0.0
  %47 = vmatpush1.msra.mxu0 0.0
  %48 = vmatprep.subr.mxu0 0.0
  %49 = vmatpush1.msra.mxu0 0.0
  %50 = vmatprep.subr.mxu0 0.0
  %51 = vmatpush1.msra.mxu0 0.0
  %52 = vmatprep.subr.mxu0 0.0
  %53 = vmatpush1.msra.mxu0 0.0
  %54 = vmatprep.subr.mxu0 0.0
  %55 = vmatpush1.msra.mxu0 0.0
  %56 = vmatprep.subr.mxu0 0.0
  %57 = vmatpush1.msra.mxu0 0.0
  %58 = vmatprep.subr.mxu0 0.0
  %59 = vmatpush1.msra.mxu0 0.0
  %60 = vmatprep.subr.mxu0 0.0
  %61 = vmatpush1.msra.mxu0 0.0
  %62 = vmatprep.subr.mxu0 0.0
  %63 = vmatpush1.msra.mxu0 0.0
  %64 = vmatprep.subr.mxu0 0.0
  %65 = vmatpush1.msra.mxu0 0.0
  %66 = vmatprep.subr.mxu0 0.0
  %v67 = vand.u32 %v23, 4294901760
  %68 = vmatpush1.msra.mxu0 %v67
  %69 = vmatprep.subr.mxu0 0.0
  %v70 = vand.u32 %v22, 4294901760
  %71 = vmatpush1.msra.mxu0 %v70
  %72 = vmatprep.subr.mxu0 0.0
  %73 = vmatpush2.msra.mxu0 0.0
  %74 = vmatprep.subr.mxu0 0.0
  %75 = vmatpush2.msra.mxu0 0.0
  %76 = vmatprep.subr.mxu0 0.0
  %77 = vmatpush2.msra.mxu0 0.0
  %78 = vmatprep.subr.mxu0 0.0
  %79 = vmatpush2.msra.mxu0 0.0
  %80 = vmatprep.subr.mxu0 0.0
  %81 = vmatpush2.msra.mxu0 0.0
  %82 = vmatprep.subr.mxu0 0.0
  %83 = vmatpush2.msra.mxu0 0.0
  %84 = vmatprep.subr.mxu0 0.0
  %85 = vmatpush2.msra.mxu0 0.0
  %86 = vmatprep.subr.mxu0 0.0
  %87 = vmatpush2.msra.mxu0 0.0
  %88 = vmatprep.subr.mxu0 0.0
  %89 = vmatpush2.msra.mxu0 0.0
  %90 = vmatprep.subr.mxu0 0.0
  %91 = vmatpush2.msra.mxu0 0.0
  %92 = vmatprep.subr.mxu0 0.0
  %93 = vmatpush2.msra.mxu0 0.0
  %94 = vmatprep.subr.mxu0 0.0
  %95 = vmatpush2.msra.mxu0 0.0
  %96 = vmatprep.subr.mxu0 0.0
  %97 = vmatpush2.msra.mxu0 0.0
  %98 = vmatprep.subr.mxu0 0.0
  %99 = vmatpush2.msra.mxu0 0.0
  %100 = vmatprep.subr.mxu0 0.0
  %101 = vmatpush2.msra.mxu0 0.0
  %102 = vmatprep.subr.mxu0 0.0
  %103 = vmatpush2.msra.mxu0 0.0
  %104 = vmatprep.mubr.f32.mxu0 0.0
  %v105 = vand.u32 %v33, 4294901760
  %v106 = vsub.f32 %v33, %v105
  %v107 = vand.u32 %v106, 4294901760
  %v108 = vsub.f32 %v106, %v107
  %v109 = vand.u32 %v108, 4294901760
  %110 = vmatmul.mubr.f32.gmra.mxu0 %v109
  %v111 = vpop.f32.mrf.mxu0
  %v112 = vadd.f32 %v29, %v111
  %v113 = vpop.f32.mrf.mxu0
  %114 = vmatprep.mubr.f32.mxu0 0.0
  %v115 = vand.u32 %v36, 4294901760
  %v116 = vsub.f32 %v36, %v115
  %v117 = vand.u32 %v116, 4294901760
  %v118 = vsub.f32 %v116, %v117
  %v119 = vand.u32 %v118, 4294901760
  %120 = vmatmul.mubr.f32.gmra.mxu0 %v119
  %v121 = vpop.f32.mrf.mxu0
  %v122 = vadd.f32 %v29, %v121
  %v123 = vpop.f32.mrf.mxu0
  %124 = vdwg.mxu0
  %125 = vmatprep.subr.mxu0 0.0
  %126 = vmatpush1.msra.mxu0 0.0
  %127 = vmatprep.subr.mxu0 0.0
  %128 = vmatpush1.msra.mxu0 0.0
  %129 = vmatprep.subr.mxu0 0.0
  %130 = vmatpush1.msra.mxu0 0.0
  %131 = vmatprep.subr.mxu0 0.0
  %132 = vmatpush1.msra.mxu0 0.0
  %133 = vmatprep.subr.mxu0 0.0
  %134 = vmatpush1.msra.mxu0 0.0
  %135 = vmatprep.subr.mxu0 0.0
  %136 = vmatpush1.msra.mxu0 0.0
  %137 = vmatprep.subr.mxu0 0.0
  %138 = vmatpush1.msra.mxu0 0.0
  %139 = vmatprep.subr.mxu0 0.0
  %140 = vmatpush1.msra.mxu0 0.0
  %141 = vmatprep.subr.mxu0 0.0
  %142 = vmatpush1.msra.mxu0 0.0
  %143 = vmatprep.subr.mxu0 0.0
  %144 = vmatpush1.msra.mxu0 0.0
  %145 = vmatprep.subr.mxu0 0.0
  %146 = vmatpush1.msra.mxu0 0.0
  %147 = vmatprep.subr.mxu0 0.0
  %148 = vmatpush1.msra.mxu0 0.0
  %149 = vmatprep.subr.mxu0 0.0
  %150 = vmatpush1.msra.mxu0 0.0
  %151 = vmatprep.subr.mxu0 0.0
  %152 = vmatpush1.msra.mxu0 0.0
  %153 = vmatprep.subr.mxu0 0.0
  %v154 = vand.u32 %v23, 4294901760
  %v155 = vsub.f32 %v23, %v154
  %v156 = vand.u32 %v155, 4294901760
  %v157 = vsub.f32 %v155, %v156
  %v158 = vand.u32 %v157, 4294901760
  %159 = vmatpush1.msra.mxu0 %v158
  %160 = vmatprep.subr.mxu0 0.0
  %v161 = vand.u32 %v22, 4294901760
  %v162 = vsub.f32 %v22, %v161
  %v163 = vand.u32 %v162, 4294901760
  %v164 = vsub.f32 %v162, %v163
  %v165 = vand.u32 %v164, 4294901760
  %166 = vmatpush1.msra.mxu0 %v165
  %167 = vmatprep.subr.mxu0 0.0
  %168 = vmatpush2.msra.mxu0 0.0
  %169 = vmatprep.subr.mxu0 0.0
  %170 = vmatpush2.msra.mxu0 0.0
  %171 = vmatprep.subr.mxu0 0.0
  %172 = vmatpush2.msra.mxu0 0.0
  %173 = vmatprep.subr.mxu0 0.0
  %174 = vmatpush2.msra.mxu0 0.0
  %175 = vmatprep.subr.mxu0 0.0
  %176 = vmatpush2.msra.mxu0 0.0
  %177 = vmatprep.subr.mxu0 0.0
  %178 = vmatpush2.msra.mxu0 0.0
  %179 = vmatprep.subr.mxu0 0.0
  %180 = vmatpush2.msra.mxu0 0.0
  %181 = vmatprep.subr.mxu0 0.0
  %182 = vmatpush2.msra.mxu0 0.0
  %183 = vmatprep.subr.mxu0 0.0
  %184 = vmatpush2.msra.mxu0 0.0
  %185 = vmatprep.subr.mxu0 0.0
  %186 = vmatpush2.msra.mxu0 0.0
  %187 = vmatprep.subr.mxu0 0.0
  %188 = vmatpush2.msra.mxu0 0.0
  %189 = vmatprep.subr.mxu0 0.0
  %190 = vmatpush2.msra.mxu0 0.0
  %191 = vmatprep.subr.mxu0 0.0
  %192 = vmatpush2.msra.mxu0 0.0
  %193 = vmatprep.subr.mxu0 0.0
  %194 = vmatpush2.msra.mxu0 0.0
  %195 = vmatprep.subr.mxu0 0.0
  %196 = vmatpush2.msra.mxu0 0.0
  %197 = vmatprep.subr.mxu0 0.0
  %198 = vmatpush2.msra.mxu0 0.0
  %199 = vmatprep.mubr.f32.mxu0 0.0
  %v200 = vand.u32 %v33, 4294901760
  %201 = vmatmul.mubr.f32.gmra.mxu0 %v200
  %v202 = vpop.f32.mrf.mxu0
  %v203 = vadd.f32 %v112, %v202
  %v204 = vpop.f32.mrf.mxu0
  %205 = vmatprep.mubr.f32.mxu0 0.0
  %v206 = vand.u32 %v36, 4294901760
  %207 = vmatmul.mubr.f32.gmra.mxu0 %v206
  %v208 = vpop.f32.mrf.mxu0
  %v209 = vadd.f32 %v122, %v208
  %v210 = vpop.f32.mrf.mxu0
  %211 = vdwg.mxu0
  %212 = vmatprep.subr.mxu0 0.0
  %213 = vmatpush1.msra.mxu0 0.0
  %214 = vmatprep.subr.mxu0 0.0
  %215 = vmatpush1.msra.mxu0 0.0
  %216 = vmatprep.subr.mxu0 0.0
  %217 = vmatpush1.msra.mxu0 0.0
  %218 = vmatprep.subr.mxu0 0.0
  %219 = vmatpush1.msra.mxu0 0.0
  %220 = vmatprep.subr.mxu0 0.0
  %221 = vmatpush1.msra.mxu0 0.0
  %222 = vmatprep.subr.mxu0 0.0
  %223 = vmatpush1.msra.mxu0 0.0
  %224 = vmatprep.subr.mxu0 0.0
  %225 = vmatpush1.msra.mxu0 0.0
  %226 = vmatprep.subr.mxu0 0.0
  %227 = vmatpush1.msra.mxu0 0.0
  %228 = vmatprep.subr.mxu0 0.0
  %229 = vmatpush1.msra.mxu0 0.0
  %230 = vmatprep.subr.mxu0 0.0
  %231 = vmatpush1.msra.mxu0 0.0
  %232 = vmatprep.subr.mxu0 0.0
  %233 = vmatpush1.msra.mxu0 0.0
  %234 = vmatprep.subr.mxu0 0.0
  %235 = vmatpush1.msra.mxu0 0.0
  %236 = vmatprep.subr.mxu0 0.0
  %237 = vmatpush1.msra.mxu0 0.0
  %238 = vmatprep.subr.mxu0 0.0
  %239 = vmatpush1.msra.mxu0 0.0
  %240 = vmatprep.subr.mxu0 0.0
  %v241 = vand.u32 %v23, 4294901760
  %v242 = vsub.f32 %v23, %v241
  %243 = vmatpush1.msra.mxu0 %v242
  %244 = vmatprep.subr.mxu0 0.0
  %v245 = vand.u32 %v22, 4294901760
  %v246 = vsub.f32 %v22, %v245
  %247 = vmatpush1.msra.mxu0 %v246
  %248 = vmatprep.subr.mxu0 0.0
  %249 = vmatpush2.msra.mxu0 0.0
  %250 = vmatprep.subr.mxu0 0.0
  %251 = vmatpush2.msra.mxu0 0.0
  %252 = vmatprep.subr.mxu0 0.0
  %253 = vmatpush2.msra.mxu0 0.0
  %254 = vmatprep.subr.mxu0 0.0
  %255 = vmatpush2.msra.mxu0 0.0
  %256 = vmatprep.subr.mxu0 0.0
  %257 = vmatpush2.msra.mxu0 0.0
  %258 = vmatprep.subr.mxu0 0.0
  %259 = vmatpush2.msra.mxu0 0.0
  %260 = vmatprep.subr.mxu0 0.0
  %261 = vmatpush2.msra.mxu0 0.0
  %262 = vmatprep.subr.mxu0 0.0
  %263 = vmatpush2.msra.mxu0 0.0
  %264 = vmatprep.subr.mxu0 0.0
  %265 = vmatpush2.msra.mxu0 0.0
  %266 = vmatprep.subr.mxu0 0.0
  %267 = vmatpush2.msra.mxu0 0.0
  %268 = vmatprep.subr.mxu0 0.0
  %269 = vmatpush2.msra.mxu0 0.0
  %270 = vmatprep.subr.mxu0 0.0
  %271 = vmatpush2.msra.mxu0 0.0
  %272 = vmatprep.subr.mxu0 0.0
  %273 = vmatpush2.msra.mxu0 0.0
  %274 = vmatprep.subr.mxu0 0.0
  %275 = vmatpush2.msra.mxu0 0.0
  %276 = vmatprep.subr.mxu0 0.0
  %277 = vmatpush2.msra.mxu0 0.0
  %278 = vmatprep.subr.mxu0 0.0
  %279 = vmatpush2.msra.mxu0 0.0
  %280 = vmatprep.mubr.f32.mxu0 0.0
  %v281 = vand.u32 %v33, 4294901760
  %v282 = vsub.f32 %v33, %v281
  %283 = vmatmul.mubr.f32.gmra.mxu0 %v282
  %v284 = vpop.f32.mrf.mxu0
  %v285 = vadd.f32 %v203, %v284
  %v286 = vpop.f32.mrf.mxu0
  %287 = vmatprep.mubr.f32.mxu0 0.0
  %v288 = vand.u32 %v36, 4294901760
  %v289 = vsub.f32 %v36, %v288
  %290 = vmatmul.mubr.f32.gmra.mxu0 %v289
  %v291 = vpop.f32.mrf.mxu0
  %v292 = vadd.f32 %v209, %v291
  %v293 = vpop.f32.mrf.mxu0
  %294 = vdwg.mxu0
  %295 = vmatprep.subr.mxu0 0.0
  %296 = vmatpush1.msra.mxu0 0.0
  %297 = vmatprep.subr.mxu0 0.0
  %298 = vmatpush1.msra.mxu0 0.0
  %299 = vmatprep.subr.mxu0 0.0
  %300 = vmatpush1.msra.mxu0 0.0
  %301 = vmatprep.subr.mxu0 0.0
  %302 = vmatpush1.msra.mxu0 0.0
  %303 = vmatprep.subr.mxu0 0.0
  %304 = vmatpush1.msra.mxu0 0.0
  %305 = vmatprep.subr.mxu0 0.0
  %306 = vmatpush1.msra.mxu0 0.0
  %307 = vmatprep.subr.mxu0 0.0
  %308 = vmatpush1.msra.mxu0 0.0
  %309 = vmatprep.subr.mxu0 0.0
  %310 = vmatpush1.msra.mxu0 0.0
  %311 = vmatprep.subr.mxu0 0.0
  %312 = vmatpush1.msra.mxu0 0.0
  %313 = vmatprep.subr.mxu0 0.0
  %314 = vmatpush1.msra.mxu0 0.0
  %315 = vmatprep.subr.mxu0 0.0
  %316 = vmatpush1.msra.mxu0 0.0
  %317 = vmatprep.subr.mxu0 0.0
  %318 = vmatpush1.msra.mxu0 0.0
  %319 = vmatprep.subr.mxu0 0.0
  %320 = vmatpush1.msra.mxu0 0.0
  %321 = vmatprep.subr.mxu0 0.0
  %322 = vmatpush1.msra.mxu0 0.0
  %323 = vmatprep.subr.mxu0 0.0
  %v324 = vand.u32 %v23, 4294901760
  %325 = vmatpush1.msra.mxu0 %v324
  %326 = vmatprep.subr.mxu0 0.0
  %v327 = vand.u32 %v22, 4294901760
  %328 = vmatpush1.msra.mxu0 %v327
  %329 = vmatprep.subr.mxu0 0.0
  %330 = vmatpush2.msra.mxu0 0.0
  %331 = vmatprep.subr.mxu0 0.0
  %332 = vmatpush2.msra.mxu0 0.0
  %333 = vmatprep.subr.mxu0 0.0
  %334 = vmatpush2.msra.mxu0 0.0
  %335 = vmatprep.subr.mxu0 0.0
  %336 = vmatpush2.msra.mxu0 0.0
  %337 = vmatprep.subr.mxu0 0.0
  %338 = vmatpush2.msra.mxu0 0.0
  %339 = vmatprep.subr.mxu0 0.0
  %340 = vmatpush2.msra.mxu0 0.0
  %341 = vmatprep.subr.mxu0 0.0
  %342 = vmatpush2.msra.mxu0 0.0
  %343 = vmatprep.subr.mxu0 0.0
  %344 = vmatpush2.msra.mxu0 0.0
  %345 = vmatprep.subr.mxu0 0.0
  %346 = vmatpush2.msra.mxu0 0.0
  %347 = vmatprep.subr.mxu0 0.0
  %348 = vmatpush2.msra.mxu0 0.0
  %349 = vmatprep.subr.mxu0 0.0
  %350 = vmatpush2.msra.mxu0 0.0
  %351 = vmatprep.subr.mxu0 0.0
  %352 = vmatpush2.msra.mxu0 0.0
  %353 = vmatprep.subr.mxu0 0.0
  %354 = vmatpush2.msra.mxu0 0.0
  %355 = vmatprep.subr.mxu0 0.0
  %356 = vmatpush2.msra.mxu0 0.0
  %357 = vmatprep.subr.mxu0 0.0
  %358 = vmatpush2.msra.mxu0 0.0
  %359 = vmatprep.subr.mxu0 0.0
  %360 = vmatpush2.msra.mxu0 0.0
  %361 = vmatprep.mubr.f32.mxu0 0.0
  %v362 = vand.u32 %v33, 4294901760
  %v363 = vsub.f32 %v33, %v362
  %v364 = vand.u32 %v363, 4294901760
  %365 = vmatmul.mubr.f32.gmra.mxu0 %v364
  %v366 = vpop.f32.mrf.mxu0
  %v367 = vadd.f32 %v285, %v366
  %v368 = vpop.f32.mrf.mxu0
  %369 = vmatprep.mubr.f32.mxu0 0.0
  %v370 = vand.u32 %v36, 4294901760
  %v371 = vsub.f32 %v36, %v370
  %v372 = vand.u32 %v371, 4294901760
  %373 = vmatmul.mubr.f32.gmra.mxu0 %v372
  %v374 = vpop.f32.mrf.mxu0
  %v375 = vadd.f32 %v292, %v374
  %v376 = vpop.f32.mrf.mxu0
  %377 = vdwg.mxu0
  %378 = vmatprep.subr.mxu0 0.0
  %379 = vmatpush1.msra.mxu0 0.0
  %380 = vmatprep.subr.mxu0 0.0
  %381 = vmatpush1.msra.mxu0 0.0
  %382 = vmatprep.subr.mxu0 0.0
  %383 = vmatpush1.msra.mxu0 0.0
  %384 = vmatprep.subr.mxu0 0.0
  %385 = vmatpush1.msra.mxu0 0.0
  %386 = vmatprep.subr.mxu0 0.0
  %387 = vmatpush1.msra.mxu0 0.0
  %388 = vmatprep.subr.mxu0 0.0
  %389 = vmatpush1.msra.mxu0 0.0
  %390 = vmatprep.subr.mxu0 0.0
  %391 = vmatpush1.msra.mxu0 0.0
  %392 = vmatprep.subr.mxu0 0.0
  %393 = vmatpush1.msra.mxu0 0.0
  %394 = vmatprep.subr.mxu0 0.0
  %395 = vmatpush1.msra.mxu0 0.0
  %396 = vmatprep.subr.mxu0 0.0
  %397 = vmatpush1.msra.mxu0 0.0
  %398 = vmatprep.subr.mxu0 0.0
  %399 = vmatpush1.msra.mxu0 0.0
  %400 = vmatprep.subr.mxu0 0.0
  %401 = vmatpush1.msra.mxu0 0.0
  %402 = vmatprep.subr.mxu0 0.0
  %403 = vmatpush1.msra.mxu0 0.0
  %404 = vmatprep.subr.mxu0 0.0
  %405 = vmatpush1.msra.mxu0 0.0
  %406 = vmatprep.subr.mxu0 0.0
  %v407 = vand.u32 %v23, 4294901760
  %v408 = vsub.f32 %v23, %v407
  %v409 = vand.u32 %v408, 4294901760
  %410 = vmatpush1.msra.mxu0 %v409
  %411 = vmatprep.subr.mxu0 0.0
  %v412 = vand.u32 %v22, 4294901760
  %v413 = vsub.f32 %v22, %v412
  %v414 = vand.u32 %v413, 4294901760
  %415 = vmatpush1.msra.mxu0 %v414
  %416 = vmatprep.subr.mxu0 0.0
  %417 = vmatpush2.msra.mxu0 0.0
  %418 = vmatprep.subr.mxu0 0.0
  %419 = vmatpush2.msra.mxu0 0.0
  %420 = vmatprep.subr.mxu0 0.0
  %421 = vmatpush2.msra.mxu0 0.0
  %422 = vmatprep.subr.mxu0 0.0
  %423 = vmatpush2.msra.mxu0 0.0
  %424 = vmatprep.subr.mxu0 0.0
  %425 = vmatpush2.msra.mxu0 0.0
  %426 = vmatprep.subr.mxu0 0.0
  %427 = vmatpush2.msra.mxu0 0.0
  %428 = vmatprep.subr.mxu0 0.0
  %429 = vmatpush2.msra.mxu0 0.0
  %430 = vmatprep.subr.mxu0 0.0
  %431 = vmatpush2.msra.mxu0 0.0
  %432 = vmatprep.subr.mxu0 0.0
  %433 = vmatpush2.msra.mxu0 0.0
  %434 = vmatprep.subr.mxu0 0.0
  %435 = vmatpush2.msra.mxu0 0.0
  %436 = vmatprep.subr.mxu0 0.0
  %437 = vmatpush2.msra.mxu0 0.0
  %438 = vmatprep.subr.mxu0 0.0
  %439 = vmatpush2.msra.mxu0 0.0
  %440 = vmatprep.subr.mxu0 0.0
  %441 = vmatpush2.msra.mxu0 0.0
  %442 = vmatprep.subr.mxu0 0.0
  %443 = vmatpush2.msra.mxu0 0.0
  %444 = vmatprep.subr.mxu0 0.0
  %445 = vmatpush2.msra.mxu0 0.0
  %446 = vmatprep.subr.mxu0 0.0
  %447 = vmatpush2.msra.mxu0 0.0
  %448 = vmatprep.mubr.f32.mxu0 0.0
  %v449 = vand.u32 %v33, 4294901760
  %450 = vmatmul.mubr.f32.gmra.mxu0 %v449
  %v451 = vpop.f32.mrf.mxu0
  %v452 = vadd.f32 %v367, %v451
  %v453 = vpop.f32.mrf.mxu0
  %454 = vmatprep.mubr.f32.mxu0 0.0
  %v455 = vand.u32 %v36, 4294901760
  %456 = vmatmul.mubr.f32.gmra.mxu0 %v455
  %v457 = vpop.f32.mrf.mxu0
  %v458 = vadd.f32 %v375, %v457
  %v459 = vpop.f32.mrf.mxu0
  %460 = vdwg.mxu0
  %461 = vmatprep.subr.mxu0 0.0
  %462 = vmatpush1.msra.mxu0 0.0
  %463 = vmatprep.subr.mxu0 0.0
  %464 = vmatpush1.msra.mxu0 0.0
  %465 = vmatprep.subr.mxu0 0.0
  %466 = vmatpush1.msra.mxu0 0.0
  %467 = vmatprep.subr.mxu0 0.0
  %468 = vmatpush1.msra.mxu0 0.0
  %469 = vmatprep.subr.mxu0 0.0
  %470 = vmatpush1.msra.mxu0 0.0
  %471 = vmatprep.subr.mxu0 0.0
  %472 = vmatpush1.msra.mxu0 0.0
  %473 = vmatprep.subr.mxu0 0.0
  %474 = vmatpush1.msra.mxu0 0.0
  %475 = vmatprep.subr.mxu0 0.0
  %476 = vmatpush1.msra.mxu0 0.0
  %477 = vmatprep.subr.mxu0 0.0
  %478 = vmatpush1.msra.mxu0 0.0
  %479 = vmatprep.subr.mxu0 0.0
  %480 = vmatpush1.msra.mxu0 0.0
  %481 = vmatprep.subr.mxu0 0.0
  %482 = vmatpush1.msra.mxu0 0.0
  %483 = vmatprep.subr.mxu0 0.0
  %484 = vmatpush1.msra.mxu0 0.0
  %485 = vmatprep.subr.mxu0 0.0
  %486 = vmatpush1.msra.mxu0 0.0
  %487 = vmatprep.subr.mxu0 0.0
  %488 = vmatpush1.msra.mxu0 0.0
  %489 = vmatprep.subr.mxu0 0.0
  %v490 = vand.u32 %v23, 4294901760
  %491 = vmatpush1.msra.mxu0 %v490
  %492 = vmatprep.subr.mxu0 0.0
  %v493 = vand.u32 %v22, 4294901760
  %494 = vmatpush1.msra.mxu0 %v493
  %495 = vmatprep.subr.mxu0 0.0
  %496 = vmatpush2.msra.mxu0 0.0
  %497 = vmatprep.subr.mxu0 0.0
  %498 = vmatpush2.msra.mxu0 0.0
  %499 = vmatprep.subr.mxu0 0.0
  %500 = vmatpush2.msra.mxu0 0.0
  %501 = vmatprep.subr.mxu0 0.0
  %502 = vmatpush2.msra.mxu0 0.0
  %503 = vmatprep.subr.mxu0 0.0
  %504 = vmatpush2.msra.mxu0 0.0
  %505 = vmatprep.subr.mxu0 0.0
  %506 = vmatpush2.msra.mxu0 0.0
  %507 = vmatprep.subr.mxu0 0.0
  %508 = vmatpush2.msra.mxu0 0.0
  %509 = vmatprep.subr.mxu0 0.0
  %510 = vmatpush2.msra.mxu0 0.0
  %511 = vmatprep.subr.mxu0 0.0
  %512 = vmatpush2.msra.mxu0 0.0
  %513 = vmatprep.subr.mxu0 0.0
  %514 = vmatpush2.msra.mxu0 0.0
  %515 = vmatprep.subr.mxu0 0.0
  %516 = vmatpush2.msra.mxu0 0.0
  %517 = vmatprep.subr.mxu0 0.0
  %518 = vmatpush2.msra.mxu0 0.0
  %519 = vmatprep.subr.mxu0 0.0
  %520 = vmatpush2.msra.mxu0 0.0
  %521 = vmatprep.subr.mxu0 0.0
  %522 = vmatpush2.msra.mxu0 0.0
  %523 = vmatprep.subr.mxu0 0.0
  %524 = vmatpush2.msra.mxu0 0.0
  %525 = vmatprep.subr.mxu0 0.0
  %526 = vmatpush2.msra.mxu0 0.0
  %527 = vmatprep.mubr.f32.mxu0 0.0
  %v528 = vand.u32 %v33, 4294901760
  %529 = vmatmul.mubr.f32.gmra.mxu0 %v528
  %v530 = vpop.f32.mrf.mxu0
  %v531 = vadd.f32 %v452, %v530
  %v532 = vpop.f32.mrf.mxu0
  %533 = vmatprep.mubr.f32.mxu0 0.0
  %v534 = vand.u32 %v36, 4294901760
  %535 = vmatmul.mubr.f32.gmra.mxu0 %v534
  %v536 = vpop.f32.mrf.mxu0
  %v537 = vadd.f32 %v458, %v536
  %v538 = vpop.f32.mrf.mxu0
  %539 = vdwg.mxu0
  %v540 = vxor.u32 %v531, 2147483648
  %v541 = vxor.u32 %v537, 2147483648
  %v542 = vmul.f32 %v540, 1.442695
  %v543 = vpow.pop %v542
  %v544 = vmul.f32 %v541, 1.442695
  %v545 = vpow.pop %v544
  %v546 = vadd.f32 %v543, 1.0
  %v547 = vadd.f32 %v545, 1.0
  %v548 = vrcp.pop %v546
  %v549 = vmul.f32 1.0, %v548
  %v550 = vrcp.pop %v547
  %v551 = vmul.f32 1.0, %v550
  %v552 = vmul.f32 %v531, %v549
  %v553 = vmul.f32 %v537, %v551
  %v554 = vld [vmem:[%s3] sm:$0xf]
  %v555 = vld [vmem:[%s4] sm:$0xf]
  %557 = vset.pattern.permute.xlu0 0
  %558 = vperm.xlu0 %557, %v555
  %v559 = vpop.permute.xlu0 %558
  %vm561 = vcmask 261120
  %v563 = vsel %vm561, %v554, 0
  %v566 = vsel %vm561, %v552, 0
  %v569 = vsel %vm561, %v553, 0
  %571 = vmatprep.subr.mxu0 0.0
  %572 = vmatpush1.xpose.msra.mxu0 0.0
  %573 = vmatprep.subr.mxu0 0.0
  %574 = vmatpush1.xpose.msra.mxu0 0.0
  %575 = vmatprep.subr.mxu0 0.0
  %576 = vmatpush1.xpose.msra.mxu0 0.0
  %577 = vmatprep.subr.mxu0 0.0
  %578 = vmatpush1.xpose.msra.mxu0 0.0
  %579 = vmatprep.subr.mxu0 0.0
  %580 = vmatpush1.xpose.msra.mxu0 0.0
  %581 = vmatprep.subr.mxu0 0.0
  %582 = vmatpush1.xpose.msra.mxu0 0.0
  %583 = vmatprep.subr.mxu0 0.0
  %584 = vmatpush1.xpose.msra.mxu0 0.0
  %585 = vmatprep.subr.mxu0 0.0
  %586 = vmatpush1.xpose.msra.mxu0 0.0
  %587 = vmatprep.subr.mxu0 0.0
  %588 = vmatpush1.xpose.msra.mxu0 0.0
  %589 = vmatprep.subr.mxu0 0.0
  %590 = vmatpush1.xpose.msra.mxu0 0.0
  %591 = vmatprep.subr.mxu0 0.0
  %592 = vmatpush1.xpose.msra.mxu0 0.0
  %593 = vmatprep.subr.mxu0 0.0
  %594 = vmatpush1.xpose.msra.mxu0 0.0
  %595 = vmatprep.subr.mxu0 0.0
  %596 = vmatpush1.xpose.msra.mxu0 0.0
  %597 = vmatprep.subr.mxu0 0.0
  %598 = vmatpush1.xpose.msra.mxu0 0.0
  %599 = vmatprep.subr.mxu0 0.0
  %v600 = vand.u32 %v569, 4294901760
  %601 = vmatpush1.xpose.msra.mxu0 %v600
  %602 = vmatprep.subr.mxu0 0.0
  %v603 = vand.u32 %v566, 4294901760
  %604 = vmatpush1.xpose.msra.mxu0 %v603
  %605 = vmatprep.subr.mxu0 0.0
  %606 = vmatpush2.xpose.msra.mxu0 0.0
  %607 = vmatprep.subr.mxu0 0.0
  %608 = vmatpush2.xpose.msra.mxu0 0.0
  %609 = vmatprep.subr.mxu0 0.0
  %610 = vmatpush2.xpose.msra.mxu0 0.0
  %611 = vmatprep.subr.mxu0 0.0
  %612 = vmatpush2.xpose.msra.mxu0 0.0
  %613 = vmatprep.subr.mxu0 0.0
  %614 = vmatpush2.xpose.msra.mxu0 0.0
  %615 = vmatprep.subr.mxu0 0.0
  %616 = vmatpush2.xpose.msra.mxu0 0.0
  %617 = vmatprep.subr.mxu0 0.0
  %618 = vmatpush2.xpose.msra.mxu0 0.0
  %619 = vmatprep.subr.mxu0 0.0
  %620 = vmatpush2.xpose.msra.mxu0 0.0
  %621 = vmatprep.subr.mxu0 0.0
  %622 = vmatpush2.xpose.msra.mxu0 0.0
  %623 = vmatprep.subr.mxu0 0.0
  %624 = vmatpush2.xpose.msra.mxu0 0.0
  %625 = vmatprep.subr.mxu0 0.0
  %626 = vmatpush2.xpose.msra.mxu0 0.0
  %627 = vmatprep.subr.mxu0 0.0
  %628 = vmatpush2.xpose.msra.mxu0 0.0
  %629 = vmatprep.subr.mxu0 0.0
  %630 = vmatpush2.xpose.msra.mxu0 0.0
  %631 = vmatprep.subr.mxu0 0.0
  %632 = vmatpush2.xpose.msra.mxu0 0.0
  %633 = vmatprep.subr.mxu0 0.0
  %634 = vmatpush2.xpose.msra.mxu0 0.0
  %635 = vmatprep.subr.mxu0 0.0
  %636 = vmatpush2.xpose.msra.mxu0 0.0
  %637 = vmatprep.mubr.f32.mxu0 0.0
  %v638 = vand.u32 %v563, 4294901760
  %v639 = vsub.f32 %v563, %v638
  %v640 = vand.u32 %v639, 4294901760
  %v641 = vsub.f32 %v639, %v640
  %v642 = vand.u32 %v641, 4294901760
  %643 = vmatmul.mubr.f32.gmra.mxu0 %v642
  %v644 = vpop.f32.mrf.mxu0
  %v645 = vadd.f32 %v559, %v644
  %v646 = vpop.f32.mrf.mxu0
  %647 = vdwg.mxu0
  %648 = vmatprep.subr.mxu0 0.0
  %649 = vmatpush1.xpose.msra.mxu0 0.0
  %650 = vmatprep.subr.mxu0 0.0
  %651 = vmatpush1.xpose.msra.mxu0 0.0
  %652 = vmatprep.subr.mxu0 0.0
  %653 = vmatpush1.xpose.msra.mxu0 0.0
  %654 = vmatprep.subr.mxu0 0.0
  %655 = vmatpush1.xpose.msra.mxu0 0.0
  %656 = vmatprep.subr.mxu0 0.0
  %657 = vmatpush1.xpose.msra.mxu0 0.0
  %658 = vmatprep.subr.mxu0 0.0
  %659 = vmatpush1.xpose.msra.mxu0 0.0
  %660 = vmatprep.subr.mxu0 0.0
  %661 = vmatpush1.xpose.msra.mxu0 0.0
  %662 = vmatprep.subr.mxu0 0.0
  %663 = vmatpush1.xpose.msra.mxu0 0.0
  %664 = vmatprep.subr.mxu0 0.0
  %665 = vmatpush1.xpose.msra.mxu0 0.0
  %666 = vmatprep.subr.mxu0 0.0
  %667 = vmatpush1.xpose.msra.mxu0 0.0
  %668 = vmatprep.subr.mxu0 0.0
  %669 = vmatpush1.xpose.msra.mxu0 0.0
  %670 = vmatprep.subr.mxu0 0.0
  %671 = vmatpush1.xpose.msra.mxu0 0.0
  %672 = vmatprep.subr.mxu0 0.0
  %673 = vmatpush1.xpose.msra.mxu0 0.0
  %674 = vmatprep.subr.mxu0 0.0
  %675 = vmatpush1.xpose.msra.mxu0 0.0
  %676 = vmatprep.subr.mxu0 0.0
  %v677 = vand.u32 %v569, 4294901760
  %v678 = vsub.f32 %v569, %v677
  %v679 = vand.u32 %v678, 4294901760
  %v680 = vsub.f32 %v678, %v679
  %v681 = vand.u32 %v680, 4294901760
  %682 = vmatpush1.xpose.msra.mxu0 %v681
  %683 = vmatprep.subr.mxu0 0.0
  %v684 = vand.u32 %v566, 4294901760
  %v685 = vsub.f32 %v566, %v684
  %v686 = vand.u32 %v685, 4294901760
  %v687 = vsub.f32 %v685, %v686
  %v688 = vand.u32 %v687, 4294901760
  %689 = vmatpush1.xpose.msra.mxu0 %v688
  %690 = vmatprep.subr.mxu0 0.0
  %691 = vmatpush2.xpose.msra.mxu0 0.0
  %692 = vmatprep.subr.mxu0 0.0
  %693 = vmatpush2.xpose.msra.mxu0 0.0
  %694 = vmatprep.subr.mxu0 0.0
  %695 = vmatpush2.xpose.msra.mxu0 0.0
  %696 = vmatprep.subr.mxu0 0.0
  %697 = vmatpush2.xpose.msra.mxu0 0.0
  %698 = vmatprep.subr.mxu0 0.0
  %699 = vmatpush2.xpose.msra.mxu0 0.0
  %700 = vmatprep.subr.mxu0 0.0
  %701 = vmatpush2.xpose.msra.mxu0 0.0
  %702 = vmatprep.subr.mxu0 0.0
  %703 = vmatpush2.xpose.msra.mxu0 0.0
  %704 = vmatprep.subr.mxu0 0.0
  %705 = vmatpush2.xpose.msra.mxu0 0.0
  %706 = vmatprep.subr.mxu0 0.0
  %707 = vmatpush2.xpose.msra.mxu0 0.0
  %708 = vmatprep.subr.mxu0 0.0
  %709 = vmatpush2.xpose.msra.mxu0 0.0
  %710 = vmatprep.subr.mxu0 0.0
  %711 = vmatpush2.xpose.msra.mxu0 0.0
  %712 = vmatprep.subr.mxu0 0.0
  %713 = vmatpush2.xpose.msra.mxu0 0.0
  %714 = vmatprep.subr.mxu0 0.0
  %715 = vmatpush2.xpose.msra.mxu0 0.0
  %716 = vmatprep.subr.mxu0 0.0
  %717 = vmatpush2.xpose.msra.mxu0 0.0
  %718 = vmatprep.subr.mxu0 0.0
  %719 = vmatpush2.xpose.msra.mxu0 0.0
  %720 = vmatprep.subr.mxu0 0.0
  %721 = vmatpush2.xpose.msra.mxu0 0.0
  %722 = vmatprep.mubr.f32.mxu0 0.0
  %v723 = vand.u32 %v563, 4294901760
  %724 = vmatmul.mubr.f32.gmra.mxu0 %v723
  %v725 = vpop.f32.mrf.mxu0
  %v726 = vadd.f32 %v645, %v725
  %v727 = vpop.f32.mrf.mxu0
  %728 = vdwg.mxu0
  %729 = vmatprep.subr.mxu0 0.0
  %730 = vmatpush1.xpose.msra.mxu0 0.0
  %731 = vmatprep.subr.mxu0 0.0
  %732 = vmatpush1.xpose.msra.mxu0 0.0
  %733 = vmatprep.subr.mxu0 0.0
  %734 = vmatpush1.xpose.msra.mxu0 0.0
  %735 = vmatprep.subr.mxu0 0.0
  %736 = vmatpush1.xpose.msra.mxu0 0.0
  %737 = vmatprep.subr.mxu0 0.0
  %738 = vmatpush1.xpose.msra.mxu0 0.0
  %739 = vmatprep.subr.mxu0 0.0
  %740 = vmatpush1.xpose.msra.mxu0 0.0
  %741 = vmatprep.subr.mxu0 0.0
  %742 = vmatpush1.xpose.msra.mxu0 0.0
  %743 = vmatprep.subr.mxu0 0.0
  %744 = vmatpush1.xpose.msra.mxu0 0.0
  %745 = vmatprep.subr.mxu0 0.0
  %746 = vmatpush1.xpose.msra.mxu0 0.0
  %747 = vmatprep.subr.mxu0 0.0
  %748 = vmatpush1.xpose.msra.mxu0 0.0
  %749 = vmatprep.subr.mxu0 0.0
  %750 = vmatpush1.xpose.msra.mxu0 0.0
  %751 = vmatprep.subr.mxu0 0.0
  %752 = vmatpush1.xpose.msra.mxu0 0.0
  %753 = vmatprep.subr.mxu0 0.0
  %754 = vmatpush1.xpose.msra.mxu0 0.0
  %755 = vmatprep.subr.mxu0 0.0
  %756 = vmatpush1.xpose.msra.mxu0 0.0
  %757 = vmatprep.subr.mxu0 0.0
  %v758 = vand.u32 %v569, 4294901760
  %v759 = vsub.f32 %v569, %v758
  %760 = vmatpush1.xpose.msra.mxu0 %v759
  %761 = vmatprep.subr.mxu0 0.0
  %v762 = vand.u32 %v566, 4294901760
  %v763 = vsub.f32 %v566, %v762
  %764 = vmatpush1.xpose.msra.mxu0 %v763
  %765 = vmatprep.subr.mxu0 0.0
  %766 = vmatpush2.xpose.msra.mxu0 0.0
  %767 = vmatprep.subr.mxu0 0.0
  %768 = vmatpush2.xpose.msra.mxu0 0.0
  %769 = vmatprep.subr.mxu0 0.0
  %770 = vmatpush2.xpose.msra.mxu0 0.0
  %771 = vmatprep.subr.mxu0 0.0
  %772 = vmatpush2.xpose.msra.mxu0 0.0
  %773 = vmatprep.subr.mxu0 0.0
  %774 = vmatpush2.xpose.msra.mxu0 0.0
  %775 = vmatprep.subr.mxu0 0.0
  %776 = vmatpush2.xpose.msra.mxu0 0.0
  %777 = vmatprep.subr.mxu0 0.0
  %778 = vmatpush2.xpose.msra.mxu0 0.0
  %779 = vmatprep.subr.mxu0 0.0
  %780 = vmatpush2.xpose.msra.mxu0 0.0
  %781 = vmatprep.subr.mxu0 0.0
  %782 = vmatpush2.xpose.msra.mxu0 0.0
  %783 = vmatprep.subr.mxu0 0.0
  %784 = vmatpush2.xpose.msra.mxu0 0.0
  %785 = vmatprep.subr.mxu0 0.0
  %786 = vmatpush2.xpose.msra.mxu0 0.0
  %787 = vmatprep.subr.mxu0 0.0
  %788 = vmatpush2.xpose.msra.mxu0 0.0
  %789 = vmatprep.subr.mxu0 0.0
  %790 = vmatpush2.xpose.msra.mxu0 0.0
  %791 = vmatprep.subr.mxu0 0.0
  %792 = vmatpush2.xpose.msra.mxu0 0.0
  %793 = vmatprep.subr.mxu0 0.0
  %794 = vmatpush2.xpose.msra.mxu0 0.0
  %795 = vmatprep.subr.mxu0 0.0
  %796 = vmatpush2.xpose.msra.mxu0 0.0
  %797 = vmatprep.mubr.f32.mxu0 0.0
  %v798 = vand.u32 %v563, 4294901760
  %v799 = vsub.f32 %v563, %v798
  %800 = vmatmul.mubr.f32.gmra.mxu0 %v799
  %v801 = vpop.f32.mrf.mxu0
  %v802 = vadd.f32 %v726, %v801
  %v803 = vpop.f32.mrf.mxu0
  %804 = vdwg.mxu0
  %805 = vmatprep.subr.mxu0 0.0
  %806 = vmatpush1.xpose.msra.mxu0 0.0
  %807 = vmatprep.subr.mxu0 0.0
  %808 = vmatpush1.xpose.msra.mxu0 0.0
  %809 = vmatprep.subr.mxu0 0.0
  %810 = vmatpush1.xpose.msra.mxu0 0.0
  %811 = vmatprep.subr.mxu0 0.0
  %812 = vmatpush1.xpose.msra.mxu0 0.0
  %813 = vmatprep.subr.mxu0 0.0
  %814 = vmatpush1.xpose.msra.mxu0 0.0
  %815 = vmatprep.subr.mxu0 0.0
  %816 = vmatpush1.xpose.msra.mxu0 0.0
  %817 = vmatprep.subr.mxu0 0.0
  %818 = vmatpush1.xpose.msra.mxu0 0.0
  %819 = vmatprep.subr.mxu0 0.0
  %820 = vmatpush1.xpose.msra.mxu0 0.0
  %821 = vmatprep.subr.mxu0 0.0
  %822 = vmatpush1.xpose.msra.mxu0 0.0
  %823 = vmatprep.subr.mxu0 0.0
  %824 = vmatpush1.xpose.msra.mxu0 0.0
  %825 = vmatprep.subr.mxu0 0.0
  %826 = vmatpush1.xpose.msra.mxu0 0.0
  %827 = vmatprep.subr.mxu0 0.0
  %828 = vmatpush1.xpose.msra.mxu0 0.0
  %829 = vmatprep.subr.mxu0 0.0
  %830 = vmatpush1.xpose.msra.mxu0 0.0
  %831 = vmatprep.subr.mxu0 0.0
  %832 = vmatpush1.xpose.msra.mxu0 0.0
  %833 = vmatprep.subr.mxu0 0.0
  %v834 = vand.u32 %v569, 4294901760
  %835 = vmatpush1.xpose.msra.mxu0 %v834
  %836 = vmatprep.subr.mxu0 0.0
  %v837 = vand.u32 %v566, 4294901760
  %838 = vmatpush1.xpose.msra.mxu0 %v837
  %839 = vmatprep.subr.mxu0 0.0
  %840 = vmatpush2.xpose.msra.mxu0 0.0
  %841 = vmatprep.subr.mxu0 0.0
  %842 = vmatpush2.xpose.msra.mxu0 0.0
  %843 = vmatprep.subr.mxu0 0.0
  %844 = vmatpush2.xpose.msra.mxu0 0.0
  %845 = vmatprep.subr.mxu0 0.0
  %846 = vmatpush2.xpose.msra.mxu0 0.0
  %847 = vmatprep.subr.mxu0 0.0
  %848 = vmatpush2.xpose.msra.mxu0 0.0
  %849 = vmatprep.subr.mxu0 0.0
  %850 = vmatpush2.xpose.msra.mxu0 0.0
  %851 = vmatprep.subr.mxu0 0.0
  %852 = vmatpush2.xpose.msra.mxu0 0.0
  %853 = vmatprep.subr.mxu0 0.0
  %854 = vmatpush2.xpose.msra.mxu0 0.0
  %855 = vmatprep.subr.mxu0 0.0
  %856 = vmatpush2.xpose.msra.mxu0 0.0
  %857 = vmatprep.subr.mxu0 0.0
  %858 = vmatpush2.xpose.msra.mxu0 0.0
  %859 = vmatprep.subr.mxu0 0.0
  %860 = vmatpush2.xpose.msra.mxu0 0.0
  %861 = vmatprep.subr.mxu0 0.0
  %862 = vmatpush2.xpose.msra.mxu0 0.0
  %863 = vmatprep.subr.mxu0 0.0
  %864 = vmatpush2.xpose.msra.mxu0 0.0
  %865 = vmatprep.subr.mxu0 0.0
  %866 = vmatpush2.xpose.msra.mxu0 0.0
  %867 = vmatprep.subr.mxu0 0.0
  %868 = vmatpush2.xpose.msra.mxu0 0.0
  %869 = vmatprep.subr.mxu0 0.0
  %870 = vmatpush2.xpose.msra.mxu0 0.0
  %871 = vmatprep.mubr.f32.mxu0 0.0
  %v872 = vand.u32 %v563, 4294901760
  %v873 = vsub.f32 %v563, %v872
  %v874 = vand.u32 %v873, 4294901760
  %875 = vmatmul.mubr.f32.gmra.mxu0 %v874
  %v876 = vpop.f32.mrf.mxu0
  %v877 = vadd.f32 %v802, %v876
  %v878 = vpop.f32.mrf.mxu0
  %879 = vdwg.mxu0
  %880 = vmatprep.subr.mxu0 0.0
  %881 = vmatpush1.xpose.msra.mxu0 0.0
  %882 = vmatprep.subr.mxu0 0.0
  %883 = vmatpush1.xpose.msra.mxu0 0.0
  %884 = vmatprep.subr.mxu0 0.0
  %885 = vmatpush1.xpose.msra.mxu0 0.0
  %886 = vmatprep.subr.mxu0 0.0
  %887 = vmatpush1.xpose.msra.mxu0 0.0
  %888 = vmatprep.subr.mxu0 0.0
  %889 = vmatpush1.xpose.msra.mxu0 0.0
  %890 = vmatprep.subr.mxu0 0.0
  %891 = vmatpush1.xpose.msra.mxu0 0.0
  %892 = vmatprep.subr.mxu0 0.0
  %893 = vmatpush1.xpose.msra.mxu0 0.0
  %894 = vmatprep.subr.mxu0 0.0
  %895 = vmatpush1.xpose.msra.mxu0 0.0
  %896 = vmatprep.subr.mxu0 0.0
  %897 = vmatpush1.xpose.msra.mxu0 0.0
  %898 = vmatprep.subr.mxu0 0.0
  %899 = vmatpush1.xpose.msra.mxu0 0.0
  %900 = vmatprep.subr.mxu0 0.0
  %901 = vmatpush1.xpose.msra.mxu0 0.0
  %902 = vmatprep.subr.mxu0 0.0
  %903 = vmatpush1.xpose.msra.mxu0 0.0
  %904 = vmatprep.subr.mxu0 0.0
  %905 = vmatpush1.xpose.msra.mxu0 0.0
  %906 = vmatprep.subr.mxu0 0.0
  %907 = vmatpush1.xpose.msra.mxu0 0.0
  %908 = vmatprep.subr.mxu0 0.0
  %v909 = vand.u32 %v569, 4294901760
  %v910 = vsub.f32 %v569, %v909
  %v911 = vand.u32 %v910, 4294901760
  %912 = vmatpush1.xpose.msra.mxu0 %v911
  %913 = vmatprep.subr.mxu0 0.0
  %v914 = vand.u32 %v566, 4294901760
  %v915 = vsub.f32 %v566, %v914
  %v916 = vand.u32 %v915, 4294901760
  %917 = vmatpush1.xpose.msra.mxu0 %v916
  %918 = vmatprep.subr.mxu0 0.0
  %919 = vmatpush2.xpose.msra.mxu0 0.0
  %920 = vmatprep.subr.mxu0 0.0
  %921 = vmatpush2.xpose.msra.mxu0 0.0
  %922 = vmatprep.subr.mxu0 0.0
  %923 = vmatpush2.xpose.msra.mxu0 0.0
  %924 = vmatprep.subr.mxu0 0.0
  %925 = vmatpush2.xpose.msra.mxu0 0.0
  %926 = vmatprep.subr.mxu0 0.0
  %927 = vmatpush2.xpose.msra.mxu0 0.0
  %928 = vmatprep.subr.mxu0 0.0
  %929 = vmatpush2.xpose.msra.mxu0 0.0
  %930 = vmatprep.subr.mxu0 0.0
  %931 = vmatpush2.xpose.msra.mxu0 0.0
  %932 = vmatprep.subr.mxu0 0.0
  %933 = vmatpush2.xpose.msra.mxu0 0.0
  %934 = vmatprep.subr.mxu0 0.0
  %935 = vmatpush2.xpose.msra.mxu0 0.0
  %936 = vmatprep.subr.mxu0 0.0
  %937 = vmatpush2.xpose.msra.mxu0 0.0
  %938 = vmatprep.subr.mxu0 0.0
  %939 = vmatpush2.xpose.msra.mxu0 0.0
  %940 = vmatprep.subr.mxu0 0.0
  %941 = vmatpush2.xpose.msra.mxu0 0.0
  %942 = vmatprep.subr.mxu0 0.0
  %943 = vmatpush2.xpose.msra.mxu0 0.0
  %944 = vmatprep.subr.mxu0 0.0
  %945 = vmatpush2.xpose.msra.mxu0 0.0
  %946 = vmatprep.subr.mxu0 0.0
  %947 = vmatpush2.xpose.msra.mxu0 0.0
  %948 = vmatprep.subr.mxu0 0.0
  %949 = vmatpush2.xpose.msra.mxu0 0.0
  %950 = vmatprep.mubr.f32.mxu0 0.0
  %v951 = vand.u32 %v563, 4294901760
  %952 = vmatmul.mubr.f32.gmra.mxu0 %v951
  %v953 = vpop.f32.mrf.mxu0
  %v954 = vadd.f32 %v877, %v953
  %v955 = vpop.f32.mrf.mxu0
  %956 = vdwg.mxu0
  %957 = vmatprep.subr.mxu0 0.0
  %958 = vmatpush1.xpose.msra.mxu0 0.0
  %959 = vmatprep.subr.mxu0 0.0
  %960 = vmatpush1.xpose.msra.mxu0 0.0
  %961 = vmatprep.subr.mxu0 0.0
  %962 = vmatpush1.xpose.msra.mxu0 0.0
  %963 = vmatprep.subr.mxu0 0.0
  %964 = vmatpush1.xpose.msra.mxu0 0.0
  %965 = vmatprep.subr.mxu0 0.0
  %966 = vmatpush1.xpose.msra.mxu0 0.0
  %967 = vmatprep.subr.mxu0 0.0
  %968 = vmatpush1.xpose.msra.mxu0 0.0
  %969 = vmatprep.subr.mxu0 0.0
  %970 = vmatpush1.xpose.msra.mxu0 0.0
  %971 = vmatprep.subr.mxu0 0.0
  %972 = vmatpush1.xpose.msra.mxu0 0.0
  %973 = vmatprep.subr.mxu0 0.0
  %974 = vmatpush1.xpose.msra.mxu0 0.0
  %975 = vmatprep.subr.mxu0 0.0
  %976 = vmatpush1.xpose.msra.mxu0 0.0
  %977 = vmatprep.subr.mxu0 0.0
  %978 = vmatpush1.xpose.msra.mxu0 0.0
  %979 = vmatprep.subr.mxu0 0.0
  %980 = vmatpush1.xpose.msra.mxu0 0.0
  %981 = vmatprep.subr.mxu0 0.0
  %982 = vmatpush1.xpose.msra.mxu0 0.0
  %983 = vmatprep.subr.mxu0 0.0
  %984 = vmatpush1.xpose.msra.mxu0 0.0
  %985 = vmatprep.subr.mxu0 0.0
  %v986 = vand.u32 %v569, 4294901760
  %987 = vmatpush1.xpose.msra.mxu0 %v986
  %988 = vmatprep.subr.mxu0 0.0
  %v989 = vand.u32 %v566, 4294901760
  %990 = vmatpush1.xpose.msra.mxu0 %v989
  %991 = vmatprep.subr.mxu0 0.0
  %992 = vmatpush2.xpose.msra.mxu0 0.0
  %993 = vmatprep.subr.mxu0 0.0
  %994 = vmatpush2.xpose.msra.mxu0 0.0
  %995 = vmatprep.subr.mxu0 0.0
  %996 = vmatpush2.xpose.msra.mxu0 0.0
  %997 = vmatprep.subr.mxu0 0.0
  %998 = vmatpush2.xpose.msra.mxu0 0.0
  %999 = vmatprep.subr.mxu0 0.0
  %1000 = vmatpush2.xpose.msra.mxu0 0.0
  %1001 = vmatprep.subr.mxu0 0.0
  %1002 = vmatpush2.xpose.msra.mxu0 0.0
  %1003 = vmatprep.subr.mxu0 0.0
  %1004 = vmatpush2.xpose.msra.mxu0 0.0
  %1005 = vmatprep.subr.mxu0 0.0
  %1006 = vmatpush2.xpose.msra.mxu0 0.0
  %1007 = vmatprep.subr.mxu0 0.0
  %1008 = vmatpush2.xpose.msra.mxu0 0.0
  %1009 = vmatprep.subr.mxu0 0.0
  %1010 = vmatpush2.xpose.msra.mxu0 0.0
  %1011 = vmatprep.subr.mxu0 0.0
  %1012 = vmatpush2.xpose.msra.mxu0 0.0
  %1013 = vmatprep.subr.mxu0 0.0
  %1014 = vmatpush2.xpose.msra.mxu0 0.0
  %1015 = vmatprep.subr.mxu0 0.0
  %1016 = vmatpush2.xpose.msra.mxu0 0.0
  %1017 = vmatprep.subr.mxu0 0.0
  %1018 = vmatpush2.xpose.msra.mxu0 0.0
  %1019 = vmatprep.subr.mxu0 0.0
  %1020 = vmatpush2.xpose.msra.mxu0 0.0
  %1021 = vmatprep.subr.mxu0 0.0
  %1022 = vmatpush2.xpose.msra.mxu0 0.0
  %1023 = vmatprep.mubr.f32.mxu0 0.0
  %v1024 = vand.u32 %v563, 4294901760
  %1025 = vmatmul.mubr.f32.gmra.mxu0 %v1024
  %v1026 = vpop.f32.mrf.mxu0
  %v1027 = vadd.f32 %v954, %v1026
  %v1028 = vpop.f32.mrf.mxu0
  %1029 = vdwg.mxu0
  %v1030 = vtanh.pop %v1027
  %v1031 = vxor.u32 %v1027, 2147483648
  %v1032 = vmul.f32 %v1031, 1.442695
  %v1033 = vpow.pop %v1032
  %v1034 = vadd.f32 %v1033, 1.0
  %v1035 = vrcp.pop %v1034
  %v1036 = vmul.f32 1.0, %v1035
  %vm1037 = vcmask 1040384
  %v1038 = vsel %vm1037, %v1030, %v1036
  %vm1039 = vcmask 1041408
  %v1040 = vsel %vm1039, %v1038, %v1027
  %vm1041 = vcmask 1042432
  %v1042 = vsel %vm1041, %v1040, %v1036
  %vm1043 = vcmask 125952
  %1044 = vst.msk [vmem:[%s5] sm:$0xf] %vm1043, %v1042
  // Predicated region
  $region22: #{portfolio_head_forward.1} parent=0 // pred_check
    _
  $region23: #{portfolio_head_forward.1} parent=0 // pred_check_branch
    %1046 = sbr.rel (0) target = $region25
  $region24: #{portfolio_head_forward.1} parent=0 // pred_region
    _
  $region25: #{portfolio_head_forward.1} parent=0 // pred_fallthru
    _
  // Predicated region
  $region26: #{portfolio_head_forward.1} parent=0 // pred_check
    _
  $region27: #{portfolio_head_forward.1} parent=0 // pred_check_branch
    %1048 = sbr.rel (0) target = $region29
  $region28: #{portfolio_head_forward.1} parent=0 // pred_region
    _
  $region29: #{portfolio_head_forward.1} parent=0 // pred_fallthru
    _

</llo_original>
